<compile_context>
chip_gen: v5e
topology: v5e:2x2
jax: 0.10.0
libtpu: 0.0.40
codegen_flags: <defaults>
</compile_context>

<pallas_src>
import functools

import numpy as np
import jax
import jax.numpy as jnp
from jax.experimental import pallas as pl
from jax.experimental.pallas import tpu as pltpu


def _cutouts_kernel(x_ref, wr_ref, wc_ref, o_ref, *, cut_size, k_blk):
    # x_ref : (NC, H, W)            bf16, grid-invariant (DMA'd once)
    # wr_ref: (1, k_blk*S, H)       bf16 height-pooling rows for this block
    # wc_ref: (1, k_blk, S, W)      bf16 width-pooling rows for this block
    # o_ref : (k_blk, NC, S, S)     x.dtype, element [kk, n, p, q]
    S = cut_size
    nc = x_ref.shape[0]
    W = x_ref.shape[2]
    wr = wr_ref[0]                                       # (k_blk*S, H)
    wc = wc_ref[0]                                       # (k_blk, S, W)

    for n in range(nc):                                  # static, unrolled
        x_n = x_ref[n]                                   # (H, W) bf16
        # Stage 1: height pooling for all k_blk cutouts in one MXU matmul.
        #   u[kk*S + p, w] = sum_h wr[kk*S + p, h] * x_n[h, w]
        u = jax.lax.dot_general(
            wr, x_n, (((1,), (0,)), ((), ())),
            preferred_element_type=jnp.float32)          # (k_blk*S, W) f32
        # Cast to bf16 BEFORE any reshaping / re-feeding the MXU.
        u = u.astype(jnp.bfloat16).reshape(k_blk, S, W)  # [kk, p, w]
        # Stage 2: width pooling, one kk-batched dot_general -> [kk, p, q]
        # (contraction over the minor dim of both operands, MXU-friendly).
        o_n = jax.lax.dot_general(
            u, wc, (((2,), (2,)), ((0,), (0,))),
            preferred_element_type=jnp.float32)          # (k_blk, S, S) f32
        # One dense store per plane: static offsets, minor dims (S, S) full.
        o_ref[:, n, :, :] = o_n.astype(o_ref.dtype)


def adaptive_pool_weights(size, offset, full_dim, out_size):
    """Averaging matrix (out_size, full_dim) that crops [offset, offset+size)
    and adaptive-avg-pools it to out_size (matching F.adaptive_avg_pool2d)."""
    w = np.zeros((out_size, full_dim), dtype=np.float32)
    for i in range(out_size):
        start = (i * size) // out_size
        end = -((-(i + 1) * size) // out_size)  # ceil((i+1)*size/out_size)
        w[i, offset + start:offset + end] = 1.0 / (end - start)
    return w


def _vmem_need_bytes(k_blk, nc, H, W, S, out_itemsize):
    """Rough per-step VMEM footprint for a given cutout block size."""
    x_bytes = nc * H * W * 2                               # bf16, 1 buffer
    wr_bytes = 2 * (k_blk * S * H) * 2                     # 2 pipeline buffers
    wc_bytes = 2 * (k_blk * S * W) * 2
    out_bytes = 2 * (k_blk * nc * S * S) * out_itemsize    # 2 pipeline buffers
    live = k_blk * S * W * (4 + 2) + k_blk * S * S * (4 + out_itemsize)
    return x_bytes + wr_bytes + wc_bytes + out_bytes + live


def make_cutouts(x, row_w, col_w, cut_size, k_blk=None):
    """x: (N,C,H,W); row_w: (cutn,S,H); col_w: (cutn,S,W) pooling matrices."""
    N, C, H, W = x.shape
    cutn = row_w.shape[0]
    S = cut_size
    nc = N * C
    out_itemsize = jnp.dtype(x.dtype).itemsize

    # VMEM capacity: query the chip; fall back to the v7x per-TC minimum.
    try:
        vmem_cap = int(pltpu.get_tpu_info().vmem_capacity_bytes)
    except Exception:
        vmem_cap = 64 * 1024 * 1024
    budget = int(0.7 * vmem_cap)

    if k_blk is None:
        # Largest cutout block that fits the VMEM budget.  At demo scale this
        # collapses to a single grid step (feedback: fine on 1-TC chips).
        k_blk = 1
        for d in range(cutn, 0, -1):
            if cutn % d == 0 and _vmem_need_bytes(d, nc, H, W, S,
                                                  out_itemsize) <= budget:
                k_blk = d
                break
    assert cutn % k_blk == 0
    num_steps = cutn // k_blk

    need = _vmem_need_bytes(k_blk, nc, H, W, S, out_itemsize)
    vmem_limit = max(int(need * 1.3), 32 * 1024 * 1024)
    vmem_limit = min(vmem_limit, int(0.9 * vmem_cap))

    # bf16 matmul operands (MXU-native); f32 accumulation inside the kernel.
    xb = x.reshape(nc, H, W).astype(jnp.bfloat16)
    wrb = row_w.astype(jnp.bfloat16).reshape(num_steps, k_blk * S, H)
    wcb = col_w.astype(jnp.bfloat16).reshape(num_steps, k_blk, S, W)

    flops = 2 * cutn * nc * S * (H * W + S * W)
    bytes_accessed = (xb.size * 2 + wrb.size * 2 + wcb.size * 2
                      + cutn * nc * S * S * out_itemsize)

    kernel = functools.partial(_cutouts_kernel, cut_size=S, k_blk=k_blk)

    # x's block index never changes.  With >1 grid step a second pipeline
    # buffer is pure VMEM waste -> single-buffer it; with a 1-step grid the
    # plain spec is used (nothing is ever revisited).
    if num_steps > 1:
        x_spec = pl.BlockSpec((nc, H, W), lambda k: (0, 0, 0),
                              pipeline_mode=pl.Buffered(1))
    else:
        x_spec = pl.BlockSpec((nc, H, W), lambda k: (0, 0, 0))

    out = pl.pallas_call(
        kernel,
        out_shape=jax.ShapeDtypeStruct((cutn, nc, S, S), x.dtype),
        grid_spec=pltpu.PrefetchScalarGridSpec(
            num_scalar_prefetch=0,
            grid=(num_steps,),
            in_specs=[
                x_spec,
                pl.BlockSpec((1, k_blk * S, H), lambda k: (k, 0, 0)),
                pl.BlockSpec((1, k_blk, S, W), lambda k: (k, 0, 0, 0)),
            ],
            out_specs=pl.BlockSpec((k_blk, nc, S, S),
                                   lambda k: (k, 0, 0, 0)),
        ),
        compiler_params=pltpu.CompilerParams(
            dimension_semantics=("parallel",),
            vmem_limit_bytes=vmem_limit),
        cost_estimate=pl.CostEstimate(flops=flops, transcendentals=0,
                                      bytes_accessed=bytes_accessed),
    )(xb, wrb, wcb)

    # out[k, n*C + c, p, q] is already torch.cat order -> free reshape only.
    return out.reshape(cutn * N, C, S, S)


def reference_cutouts(x_np, params, cut_size):
    """Pure-numpy crop + adaptive_avg_pool2d reference for correctness."""
    N, C, H, W = x_np.shape
    outs = []
    for (size, oy, ox) in params:
        crop = x_np[:, :, oy:oy + size, ox:ox + size]
        pooled = np.zeros((N, C, cut_size, cut_size), dtype=np.float32)
        for i in range(cut_size):
            ys, ye = (i * size) // cut_size, -((-(i + 1) * size) // cut_size)
            for j in range(cut_size):
                xs, xe = (j * size) // cut_size, -((-(j + 1) * size) // cut_size)
                pooled[:, :, i, j] = crop[:, :, ys:ye, xs:xe].mean(axis=(2, 3))
        outs.append(pooled)
    return np.concatenate(outs, axis=0)


if __name__ == "__main__":
    # Small shapes: batch=2, channels=4, spatial=16, cut_size=8, cutn=4.
    N, C, H, W = 2, 4, 16, 16
    cut_size, cutn, cut_pow = 8, 4, 1.0

    key = jax.random.PRNGKey(0)
    key, xk = jax.random.split(key)
    x = jax.random.normal(xk, (N, C, H, W), dtype=jnp.float32)

    sideY, sideX = H, W
    max_size = min(sideX, sideY)
    min_size = min(sideX, sideY, cut_size)

    # Deterministic "random" cutout parameters.  The size/offset draw is
    # shape-determining host-side control flow (torch.rand/randint in the
    # module); it is folded into host-built pooling matrices, not the kernel.
    params = []
    for _ in range(cutn):
        key, k1, k2, k3 = jax.random.split(key, 4)
        r = float(jax.random.uniform(k1, ()))
        size = int(r ** cut_pow * (max_size - min_size) + min_size)
        offsetx = int(jax.random.randint(k2, (), 0, sideX - size + 1))
        offsety = int(jax.random.randint(k3, (), 0, sideY - size + 1))
        params.append((size, offsety, offsetx))

    row_w = jnp.asarray(np.stack(
        [adaptive_pool_weights(s, oy, H, cut_size) for (s, oy, ox) in params]))
    col_w = jnp.asarray(np.stack(
        [adaptive_pool_weights(s, ox, W, cut_size) for (s, oy, ox) in params]))

    out = make_cutouts(x, row_w, col_w, cut_size)
    out = jax.block_until_ready(out)

    ref = reference_cutouts(np.asarray(x), params, cut_size)
    assert out.shape == (cutn * N, C, cut_size, cut_size)
    # bf16 matmul inputs (f32 accumulation) -> relaxed tolerance.
    np.testing.assert_allclose(np.asarray(out), ref, rtol=5e-2, atol=5e-2)

    print("KERNEL_OK")
</pallas_src>

<mosaic_0001>
module attributes {stable_mosaic.version = 11 : i64} {
  func.func @_cutouts_kernel(%arg0: i32, %arg1: memref<8x16x16xbf16, #tpu.memory_space<vmem>>, %arg2: memref<1x32x16xbf16, #tpu.memory_space<vmem>>, %arg3: memref<1x4x8x16xbf16, #tpu.memory_space<vmem>>, %arg4: memref<4x8x8x8xf32, #tpu.memory_space<vmem>>) attributes {dimension_semantics = [#tpu.dimension_semantics<parallel>], iteration_bounds = array<i64: 1>, scalar_prefetch = 0 : i64, scratch_operands = 0 : i64, tpu.core_type = #tpu.core_type<tc>, window_params = [{pipeline_mode = #tpu.pipeline_mode<synchronous>, transform_indices = @transform_0, window_bounds = array<i64: 8, 16, 16>}, {transform_indices = @transform_1, window_bounds = array<i64: 1, 32, 16>}, {transform_indices = @transform_2, window_bounds = array<i64: 1, 4, 8, 16>}, {transform_indices = @transform_3, window_bounds = array<i64: 4, 8, 8, 8>}]} {
    %c0 = arith.constant 0 : index
    %c0_0 = arith.constant 0 : index
    %c0_1 = arith.constant 0 : index
    %0 = vector.load %arg2[%c0, %c0_0, %c0_1] : memref<1x32x16xbf16, #tpu.memory_space<vmem>>, vector<1x32x16xbf16>
    %1 = vector.shape_cast %0 : vector<1x32x16xbf16> to vector<32x16xbf16>
    %c0_2 = arith.constant 0 : index
    %c0_3 = arith.constant 0 : index
    %c0_4 = arith.constant 0 : index
    %c0_5 = arith.constant 0 : index
    %2 = vector.load %arg3[%c0_2, %c0_3, %c0_4, %c0_5] : memref<1x4x8x16xbf16, #tpu.memory_space<vmem>>, vector<1x4x8x16xbf16>
    %3 = vector.shape_cast %2 : vector<1x4x8x16xbf16> to vector<4x8x16xbf16>
    %c0_6 = arith.constant 0 : index
    %c0_7 = arith.constant 0 : index
    %c0_8 = arith.constant 0 : index
    %4 = vector.load %arg1[%c0_6, %c0_7, %c0_8] : memref<8x16x16xbf16, #tpu.memory_space<vmem>>, vector<1x16x16xbf16>
    %5 = vector.shape_cast %4 : vector<1x16x16xbf16> to vector<16x16xbf16>
    %cst = arith.constant dense<0.000000e+00> : vector<32x16xf32>
    %6 = tpu.matmul %1, %5, %cst {dimension_numbers = #tpu.dot_dimension_numbers<[1], [0], [0], [1], [0, 0, 1, 1], [], []>} : vector<32x16xbf16>, vector<16x16xbf16>, vector<32x16xf32> -> vector<32x16xf32>
    %7 = arith.truncf %6 : vector<32x16xf32> to vector<32x16xbf16>
    %8 = vector.shape_cast %7 : vector<32x16xbf16> to vector<4x8x16xbf16>
    %cst_9 = arith.constant dense<0.000000e+00> : vector<4x8x8xf32>
    %9 = tpu.matmul %8, %3, %cst_9 {dimension_numbers = #tpu.dot_dimension_numbers<[2], [2], [1], [1], [0, 0, 0, 1, 1, 1], [0], [0]>} : vector<4x8x16xbf16>, vector<4x8x16xbf16>, vector<4x8x8xf32> -> vector<4x8x8xf32>
    %c0_10 = arith.constant 0 : index
    %c0_11 = arith.constant 0 : index
    %c0_12 = arith.constant 0 : index
    %c0_13 = arith.constant 0 : index
    %10 = vector.load %arg4[%c0_10, %c0_11, %c0_12, %c0_13] : memref<4x8x8x8xf32, #tpu.memory_space<vmem>>, vector<4x1x8x8xf32>
    %11 = vector.shape_cast %10 : vector<4x1x8x8xf32> to vector<4x8x8xf32>
    %12 = vector.shape_cast %9 : vector<4x8x8xf32> to vector<4x1x8x8xf32>
    tpu.vector_store %arg4[%c0_10, %c0_11, %c0_12, %c0_13], %12 {strides = array<i32>} : memref<4x8x8x8xf32, #tpu.memory_space<vmem>>, vector<4x1x8x8xf32>,
    %c1 = arith.constant 1 : index
    %c0_14 = arith.constant 0 : index
    %c0_15 = arith.constant 0 : index
    %13 = vector.load %arg1[%c1, %c0_14, %c0_15] : memref<8x16x16xbf16, #tpu.memory_space<vmem>>, vector<1x16x16xbf16>
    %14 = vector.shape_cast %13 : vector<1x16x16xbf16> to vector<16x16xbf16>
    %cst_16 = arith.constant dense<0.000000e+00> : vector<32x16xf32>
    %15 = tpu.matmul %1, %14, %cst_16 {dimension_numbers = #tpu.dot_dimension_numbers<[1], [0], [0], [1], [0, 0, 1, 1], [], []>} : vector<32x16xbf16>, vector<16x16xbf16>, vector<32x16xf32> -> vector<32x16xf32>
    %16 = arith.truncf %15 : vector<32x16xf32> to vector<32x16xbf16>
    %17 = vector.shape_cast %16 : vector<32x16xbf16> to vector<4x8x16xbf16>
    %cst_17 = arith.constant dense<0.000000e+00> : vector<4x8x8xf32>
    %18 = tpu.matmul %17, %3, %cst_17 {dimension_numbers = #tpu.dot_dimension_numbers<[2], [2], [1], [1], [0, 0, 0, 1, 1, 1], [0], [0]>} : vector<4x8x16xbf16>, vector<4x8x16xbf16>, vector<4x8x8xf32> -> vector<4x8x8xf32>
    %c0_18 = arith.constant 0 : index
    %c1_19 = arith.constant 1 : index
    %c0_20 = arith.constant 0 : index
    %c0_21 = arith.constant 0 : index
    %19 = vector.load %arg4[%c0_18, %c1_19, %c0_20, %c0_21] : memref<4x8x8x8xf32, #tpu.memory_space<vmem>>, vector<4x1x8x8xf32>
    %20 = vector.shape_cast %19 : vector<4x1x8x8xf32> to vector<4x8x8xf32>
    %21 = vector.shape_cast %18 : vector<4x8x8xf32> to vector<4x1x8x8xf32>
    tpu.vector_store %arg4[%c0_18, %c1_19, %c0_20, %c0_21], %21 {strides = array<i32>} : memref<4x8x8x8xf32, #tpu.memory_space<vmem>>, vector<4x1x8x8xf32>,
    %c2 = arith.constant 2 : index
    %c0_22 = arith.constant 0 : index
    %c0_23 = arith.constant 0 : index
    %22 = vector.load %arg1[%c2, %c0_22, %c0_23] : memref<8x16x16xbf16, #tpu.memory_space<vmem>>, vector<1x16x16xbf16>
    %23 = vector.shape_cast %22 : vector<1x16x16xbf16> to vector<16x16xbf16>
    %cst_24 = arith.constant dense<0.000000e+00> : vector<32x16xf32>
    %24 = tpu.matmul %1, %23, %cst_24 {dimension_numbers = #tpu.dot_dimension_numbers<[1], [0], [0], [1], [0, 0, 1, 1], [], []>} : vector<32x16xbf16>, vector<16x16xbf16>, vector<32x16xf32> -> vector<32x16xf32>
    %25 = arith.truncf %24 : vector<32x16xf32> to vector<32x16xbf16>
    %26 = vector.shape_cast %25 : vector<32x16xbf16> to vector<4x8x16xbf16>
    %cst_25 = arith.constant dense<0.000000e+00> : vector<4x8x8xf32>
    %27 = tpu.matmul %26, %3, %cst_25 {dimension_numbers = #tpu.dot_dimension_numbers<[2], [2], [1], [1], [0, 0, 0, 1, 1, 1], [0], [0]>} : vector<4x8x16xbf16>, vector<4x8x16xbf16>, vector<4x8x8xf32> -> vector<4x8x8xf32>
    %c0_26 = arith.constant 0 : index
    %c2_27 = arith.constant 2 : index
    %c0_28 = arith.constant 0 : index
    %c0_29 = arith.constant 0 : index
    %28 = vector.load %arg4[%c0_26, %c2_27, %c0_28, %c0_29] : memref<4x8x8x8xf32, #tpu.memory_space<vmem>>, vector<4x1x8x8xf32>
    %29 = vector.shape_cast %28 : vector<4x1x8x8xf32> to vector<4x8x8xf32>
    %30 = vector.shape_cast %27 : vector<4x8x8xf32> to vector<4x1x8x8xf32>
    tpu.vector_store %arg4[%c0_26, %c2_27, %c0_28, %c0_29], %30 {strides = array<i32>} : memref<4x8x8x8xf32, #tpu.memory_space<vmem>>, vector<4x1x8x8xf32>,
    %c3 = arith.constant 3 : index
    %c0_30 = arith.constant 0 : index
    %c0_31 = arith.constant 0 : index
    %31 = vector.load %arg1[%c3, %c0_30, %c0_31] : memref<8x16x16xbf16, #tpu.memory_space<vmem>>, vector<1x16x16xbf16>
    %32 = vector.shape_cast %31 : vector<1x16x16xbf16> to vector<16x16xbf16>
    %cst_32 = arith.constant dense<0.000000e+00> : vector<32x16xf32>
    %33 = tpu.matmul %1, %32, %cst_32 {dimension_numbers = #tpu.dot_dimension_numbers<[1], [0], [0], [1], [0, 0, 1, 1], [], []>} : vector<32x16xbf16>, vector<16x16xbf16>, vector<32x16xf32> -> vector<32x16xf32>
    %34 = arith.truncf %33 : vector<32x16xf32> to vector<32x16xbf16>
    %35 = vector.shape_cast %34 : vector<32x16xbf16> to vector<4x8x16xbf16>
    %cst_33 = arith.constant dense<0.000000e+00> : vector<4x8x8xf32>
    %36 = tpu.matmul %35, %3, %cst_33 {dimension_numbers = #tpu.dot_dimension_numbers<[2], [2], [1], [1], [0, 0, 0, 1, 1, 1], [0], [0]>} : vector<4x8x16xbf16>, vector<4x8x16xbf16>, vector<4x8x8xf32> -> vector<4x8x8xf32>
    %c0_34 = arith.constant 0 : index
    %c3_35 = arith.constant 3 : index
    %c0_36 = arith.constant 0 : index
    %c0_37 = arith.constant 0 : index
    %37 = vector.load %arg4[%c0_34, %c3_35, %c0_36, %c0_37] : memref<4x8x8x8xf32, #tpu.memory_space<vmem>>, vector<4x1x8x8xf32>
    %38 = vector.shape_cast %37 : vector<4x1x8x8xf32> to vector<4x8x8xf32>
    %39 = vector.shape_cast %36 : vector<4x8x8xf32> to vector<4x1x8x8xf32>
    tpu.vector_store %arg4[%c0_34, %c3_35, %c0_36, %c0_37], %39 {strides = array<i32>} : memref<4x8x8x8xf32, #tpu.memory_space<vmem>>, vector<4x1x8x8xf32>,
    %c4 = arith.constant 4 : index
    %c0_38 = arith.constant 0 : index
    %c0_39 = arith.constant 0 : index
    %40 = vector.load %arg1[%c4, %c0_38, %c0_39] : memref<8x16x16xbf16, #tpu.memory_space<vmem>>, vector<1x16x16xbf16>
    %41 = vector.shape_cast %40 : vector<1x16x16xbf16> to vector<16x16xbf16>
    %cst_40 = arith.constant dense<0.000000e+00> : vector<32x16xf32>
    %42 = tpu.matmul %1, %41, %cst_40 {dimension_numbers = #tpu.dot_dimension_numbers<[1], [0], [0], [1], [0, 0, 1, 1], [], []>} : vector<32x16xbf16>, vector<16x16xbf16>, vector<32x16xf32> -> vector<32x16xf32>
    %43 = arith.truncf %42 : vector<32x16xf32> to vector<32x16xbf16>
    %44 = vector.shape_cast %43 : vector<32x16xbf16> to vector<4x8x16xbf16>
    %cst_41 = arith.constant dense<0.000000e+00> : vector<4x8x8xf32>
    %45 = tpu.matmul %44, %3, %cst_41 {dimension_numbers = #tpu.dot_dimension_numbers<[2], [2], [1], [1], [0, 0, 0, 1, 1, 1], [0], [0]>} : vector<4x8x16xbf16>, vector<4x8x16xbf16>, vector<4x8x8xf32> -> vector<4x8x8xf32>
    %c0_42 = arith.constant 0 : index
    %c4_43 = arith.constant 4 : index
    %c0_44 = arith.constant 0 : index
    %c0_45 = arith.constant 0 : index
    %46 = vector.load %arg4[%c0_42, %c4_43, %c0_44, %c0_45] : memref<4x8x8x8xf32, #tpu.memory_space<vmem>>, vector<4x1x8x8xf32>
    %47 = vector.shape_cast %46 : vector<4x1x8x8xf32> to vector<4x8x8xf32>
    %48 = vector.shape_cast %45 : vector<4x8x8xf32> to vector<4x1x8x8xf32>
    tpu.vector_store %arg4[%c0_42, %c4_43, %c0_44, %c0_45], %48 {strides = array<i32>} : memref<4x8x8x8xf32, #tpu.memory_space<vmem>>, vector<4x1x8x8xf32>,
    %c5 = arith.constant 5 : index
    %c0_46 = arith.constant 0 : index
    %c0_47 = arith.constant 0 : index
    %49 = vector.load %arg1[%c5, %c0_46, %c0_47] : memref<8x16x16xbf16, #tpu.memory_space<vmem>>, vector<1x16x16xbf16>
    %50 = vector.shape_cast %49 : vector<1x16x16xbf16> to vector<16x16xbf16>
    %cst_48 = arith.constant dense<0.000000e+00> : vector<32x16xf32>
    %51 = tpu.matmul %1, %50, %cst_48 {dimension_numbers = #tpu.dot_dimension_numbers<[1], [0], [0], [1], [0, 0, 1, 1], [], []>} : vector<32x16xbf16>, vector<16x16xbf16>, vector<32x16xf32> -> vector<32x16xf32>
    %52 = arith.truncf %51 : vector<32x16xf32> to vector<32x16xbf16>
    %53 = vector.shape_cast %52 : vector<32x16xbf16> to vector<4x8x16xbf16>
    %cst_49 = arith.constant dense<0.000000e+00> : vector<4x8x8xf32>
    %54 = tpu.matmul %53, %3, %cst_49 {dimension_numbers = #tpu.dot_dimension_numbers<[2], [2], [1], [1], [0, 0, 0, 1, 1, 1], [0], [0]>} : vector<4x8x16xbf16>, vector<4x8x16xbf16>, vector<4x8x8xf32> -> vector<4x8x8xf32>
    %c0_50 = arith.constant 0 : index
    %c5_51 = arith.constant 5 : index
    %c0_52 = arith.constant 0 : index
    %c0_53 = arith.constant 0 : index
    %55 = vector.load %arg4[%c0_50, %c5_51, %c0_52, %c0_53] : memref<4x8x8x8xf32, #tpu.memory_space<vmem>>, vector<4x1x8x8xf32>
    %56 = vector.shape_cast %55 : vector<4x1x8x8xf32> to vector<4x8x8xf32>
    %57 = vector.shape_cast %54 : vector<4x8x8xf32> to vector<4x1x8x8xf32>
    tpu.vector_store %arg4[%c0_50, %c5_51, %c0_52, %c0_53], %57 {strides = array<i32>} : memref<4x8x8x8xf32, #tpu.memory_space<vmem>>, vector<4x1x8x8xf32>,
    %c6 = arith.constant 6 : index
    %c0_54 = arith.constant 0 : index
    %c0_55 = arith.constant 0 : index
    %58 = vector.load %arg1[%c6, %c0_54, %c0_55] : memref<8x16x16xbf16, #tpu.memory_space<vmem>>, vector<1x16x16xbf16>
    %59 = vector.shape_cast %58 : vector<1x16x16xbf16> to vector<16x16xbf16>
    %cst_56 = arith.constant dense<0.000000e+00> : vector<32x16xf32>
    %60 = tpu.matmul %1, %59, %cst_56 {dimension_numbers = #tpu.dot_dimension_numbers<[1], [0], [0], [1], [0, 0, 1, 1], [], []>} : vector<32x16xbf16>, vector<16x16xbf16>, vector<32x16xf32> -> vector<32x16xf32>
    %61 = arith.truncf %60 : vector<32x16xf32> to vector<32x16xbf16>
    %62 = vector.shape_cast %61 : vector<32x16xbf16> to vector<4x8x16xbf16>
    %cst_57 = arith.constant dense<0.000000e+00> : vector<4x8x8xf32>
    %63 = tpu.matmul %62, %3, %cst_57 {dimension_numbers = #tpu.dot_dimension_numbers<[2], [2], [1], [1], [0, 0, 0, 1, 1, 1], [0], [0]>} : vector<4x8x16xbf16>, vector<4x8x16xbf16>, vector<4x8x8xf32> -> vector<4x8x8xf32>
    %c0_58 = arith.constant 0 : index
    %c6_59 = arith.constant 6 : index
    %c0_60 = arith.constant 0 : index
    %c0_61 = arith.constant 0 : index
    %64 = vector.load %arg4[%c0_58, %c6_59, %c0_60, %c0_61] : memref<4x8x8x8xf32, #tpu.memory_space<vmem>>, vector<4x1x8x8xf32>
    %65 = vector.shape_cast %64 : vector<4x1x8x8xf32> to vector<4x8x8xf32>
    %66 = vector.shape_cast %63 : vector<4x8x8xf32> to vector<4x1x8x8xf32>
    tpu.vector_store %arg4[%c0_58, %c6_59, %c0_60, %c0_61], %66 {strides = array<i32>} : memref<4x8x8x8xf32, #tpu.memory_space<vmem>>, vector<4x1x8x8xf32>,
    %c7 = arith.constant 7 : index
    %c0_62 = arith.constant 0 : index
    %c0_63 = arith.constant 0 : index
    %67 = vector.load %arg1[%c7, %c0_62, %c0_63] : memref<8x16x16xbf16, #tpu.memory_space<vmem>>, vector<1x16x16xbf16>
    %68 = vector.shape_cast %67 : vector<1x16x16xbf16> to vector<16x16xbf16>
    %cst_64 = arith.constant dense<0.000000e+00> : vector<32x16xf32>
    %69 = tpu.matmul %1, %68, %cst_64 {dimension_numbers = #tpu.dot_dimension_numbers<[1], [0], [0], [1], [0, 0, 1, 1], [], []>} : vector<32x16xbf16>, vector<16x16xbf16>, vector<32x16xf32> -> vector<32x16xf32>
    %70 = arith.truncf %69 : vector<32x16xf32> to vector<32x16xbf16>
    %71 = vector.shape_cast %70 : vector<32x16xbf16> to vector<4x8x16xbf16>
    %cst_65 = arith.constant dense<0.000000e+00> : vector<4x8x8xf32>
    %72 = tpu.matmul %71, %3, %cst_65 {dimension_numbers = #tpu.dot_dimension_numbers<[2], [2], [1], [1], [0, 0, 0, 1, 1, 1], [0], [0]>} : vector<4x8x16xbf16>, vector<4x8x16xbf16>, vector<4x8x8xf32> -> vector<4x8x8xf32>
    %c0_66 = arith.constant 0 : index
    %c7_67 = arith.constant 7 : index
    %c0_68 = arith.constant 0 : index
    %c0_69 = arith.constant 0 : index
    %73 = vector.load %arg4[%c0_66, %c7_67, %c0_68, %c0_69] : memref<4x8x8x8xf32, #tpu.memory_space<vmem>>, vector<4x1x8x8xf32>
    %74 = vector.shape_cast %73 : vector<4x1x8x8xf32> to vector<4x8x8xf32>
    %75 = vector.shape_cast %72 : vector<4x8x8xf32> to vector<4x1x8x8xf32>
    tpu.vector_store %arg4[%c0_66, %c7_67, %c0_68, %c0_69], %75 {strides = array<i32>} : memref<4x8x8x8xf32, #tpu.memory_space<vmem>>, vector<4x1x8x8xf32>,
    return
  }
  func.func @transform_0(%arg0: i32) -> (i32, i32, i32) {
    %c0_i32 = arith.constant 0 : i32
    %c0_i32_0 = arith.constant 0 : i32
    %c0_i32_1 = arith.constant 0 : i32
    %c0_i32_2 = arith.constant 0 : i32
    return %c0_i32, %c0_i32_0, %c0_i32_1 : i32, i32, i32
  }
  func.func @transform_1(%arg0: i32) -> (i32, i32, i32) {
    %c0_i32 = arith.constant 0 : i32
    %c0_i32_0 = arith.constant 0 : i32
    %c0_i32_1 = arith.constant 0 : i32
    return %arg0, %c0_i32, %c0_i32_0 : i32, i32, i32
  }
  func.func @transform_2(%arg0: i32) -> (i32, i32, i32, i32) {
    %c0_i32 = arith.constant 0 : i32
    %c0_i32_0 = arith.constant 0 : i32
    %c0_i32_1 = arith.constant 0 : i32
    %c0_i32_2 = arith.constant 0 : i32
    return %arg0, %c0_i32, %c0_i32_0, %c0_i32_1 : i32, i32, i32, i32
  }
  func.func @transform_3(%arg0: i32) -> (i32, i32, i32, i32) {
    %c0_i32 = arith.constant 0 : i32
    %c0_i32_0 = arith.constant 0 : i32
    %c0_i32_1 = arith.constant 0 : i32
    %c0_i32_2 = arith.constant 0 : i32
    return %arg0, %c0_i32, %c0_i32_0, %c0_i32_1 : i32, i32, i32, i32
  }
}

</mosaic_0001>

<llo_original>
// kernel: tpu_custom_call.1
$region0: #{tpu_custom_call.1}
  #allocation0 [shape = 'u32[]', space=smem, size = 0x4, offset = 0x4, fixed_abs, tag = 'smem constant byte address 0x4 - core index']
  #allocation1 [shape = 'u32[72,128]{1,0:T(1,128)}', space=vmem, size = 0x9000, scoped, tag = 'internal scratch']
  %s0 = inlined_call_operand.hbm [shape: bf16[8,16,16], index: 0, kind: input, shape index: {}]
  %s1 = inlined_call_operand.vmem [shape: bf16[1,32,16], index: 1, kind: input, shape index: {}]
  %s2 = inlined_call_operand.vmem [shape: bf16[1,4,8,16], index: 2, kind: input, shape index: {}]
  %s3 = inlined_call_operand.hbm [shape: f32[4,8,8,8], index: 3, kind: output, shape index: {}]
  %s4 = sld [smem:[#allocation0]]
  $region26: #{tpu_custom_call.1} parent=0
    _
  %s6 = ssub.s32 1, %s4
  %s7 = scalar_select 0, %s6, %s4
  $region1: #{tpu_custom_call.1} parent=0
    #allocation2 [shape = 'u8[32768]{0}', space=vmem, size = 0x8000, scoped, tag = 'input window, operand 0, single buffered']
    #allocation3 [shape = 's32[1]{0}', space=sflag, size = 0x4, scoped, tag = 'scoped memory for tpu_custom_call.1']
    #allocation4 [shape = 's32[1]{0}', space=sflag, size = 0x4, scoped, tag = 'scoped memory for tpu_custom_call.1']
    #allocation5 [shape = 'u8[131072]{0}', space=vmem, size = 0x20000, scoped, tag = 'output window, operand 0, single buffered']
    %8 = vsyncpa [#allocation3], 0
    %9 = vsyncpa [#allocation4], 0
    // Predicated region
    $region2: #{tpu_custom_call.1} parent=1 // pred_check
      _
    $region3: #{tpu_custom_call.1} parent=1 // pred_check_branch
      %11 = sbr.rel (0) target = $region5
    $region4: #{tpu_custom_call.1} parent=1 // pred_region
      %13 = vsyncadd [#allocation3], 0
      %s14 = sshll.u32 %s0, 4
      %s15 = int_to_ptr.hbm [resolvable:$true] %s14
      %s16 = sshll.u32 [#allocation2], 4
      %s17 = int_to_ptr.vmem [resolvable:$true] %s16
      %22 = dma.hbm_to_vmem [thread:$0]  %s15, 1024, %s17, [#allocation3], 64, 64, 4
    $region5: #{tpu_custom_call.1} parent=1 // pred_fallthru
      _
    // Predicated region
    $region6: #{tpu_custom_call.1} parent=1 // pred_check
      _
    $region7: #{tpu_custom_call.1} parent=1 // pred_check_branch
      %24 = sbr.rel (0) target = $region9
    $region8: #{tpu_custom_call.1} parent=1 // pred_region
      _
    $region9: #{tpu_custom_call.1} parent=1 // pred_fallthru
      _
    // Predicated region
    $region10: #{tpu_custom_call.1} parent=1 // pred_check
      _
    $region11: #{tpu_custom_call.1} parent=1 // pred_check_branch
      %26 = sbr.rel (0) target = $region13
    $region12: #{tpu_custom_call.1} parent=1 // pred_region
      _
    $region13: #{tpu_custom_call.1} parent=1 // pred_fallthru
      _
    // Predicated region
    $region14: #{tpu_custom_call.1} parent=1 // pred_check
      _
    $region15: #{tpu_custom_call.1} parent=1 // pred_check_branch
      %28 = sbr.rel (0) target = $region17
    $region16: #{tpu_custom_call.1} parent=1 // pred_region
      %30 = dma.done [#allocation3], 1024
    $region17: #{tpu_custom_call.1} parent=1 // pred_fallthru
      _
    %v32 = vld [vmem:[%s1] sm:$0xf]
    %v33 = vld [vmem:[%s1 + $0x4] sm:$0xf]
    %v34 = vld [vmem:[%s1 + $0x8] sm:$0xf]
    %v35 = vld [vmem:[%s1 + $0xc] sm:$0xf]
    %v36 = vld [vmem:[%s2] sm:$0xf]
    %v37 = vld [vmem:[%s2 + $0x4] sm:$0xf]
    %v38 = vld [vmem:[%s2 + $0x8] sm:$0xf]
    %v39 = vld [vmem:[%s2 + $0xc] sm:$0xf]
    %v40 = vld [vmem:[#allocation2] sm:$0xf]
    %v41 = vld [vmem:[#allocation2 + $0x4] sm:$0xf]
    %v46 = vunpack.c.l.b16 %v32
    %v47 = vunpack.c.l.b16 %v33
    %v48 = vunpack.c.l.b16 %v34
    %v49 = vunpack.c.l.b16 %v35
    %v50 = vpack.c.b16 %v47, %v46
    %v51 = vpack.c.b16 %v49, %v48
    %v54 = vunpack.c.l.b16 %v40
    %v55 = vunpack.c.l.b16 %v41
    %v56 = vpack.c.b16 %v55, %v54
    %vm58 = vcmask 130048
    %v60 = vsel %vm58, %v50, 0
    %v63 = vsel %vm58, %v51, 0
    %65 = vmatpush.bf16.msra.mxu0 0
    %66 = vmatpush.bf16.msra.mxu0 0
    %67 = vmatpush.bf16.msra.mxu0 0
    %68 = vmatpush.bf16.msra.mxu0 0
    %69 = vmatpush.bf16.msra.mxu0 0
    %70 = vmatpush.bf16.msra.mxu0 0
    %71 = vmatpush.bf16.msra.mxu0 0
    %72 = vmatpush.bf16.msra.mxu0 %v56
    %73 = vmatmul.bf16.gmra.mxu0 %v60
    %v74 = vpop.f32.mrf.mxu0
    %v75 = vadd.f32 0.0, %v74
    %v76 = vpop.f32.mrf.mxu0
    %v77 = vadd.f32 0.0, %v76
    %78 = vmatmul.bf16.gmra.mxu0 %v63
    %v79 = vpop.f32.mrf.mxu0
    %v80 = vadd.f32 0.0, %v79
    %v81 = vpop.f32.mrf.mxu0
    %v82 = vadd.f32 0.0, %v81
    %83 = vdwg.mxu0
    %v84 = vpack.c.bf16 %v75, %v75
    %v85 = vpack.c.bf16 %v77, %v77
    %v86 = vpack.c.bf16 %v80, %v80
    %v87 = vpack.c.bf16 %v82, %v82
    %v89 = vsel %vm58, %v84, 0
    %v92 = vsel %vm58, %v36, 0
    %94 = vmatpush.bf16.xpose.msra.mxu0 0
    %95 = vmatpush.bf16.xpose.msra.mxu0 0
    %96 = vmatpush.bf16.xpose.msra.mxu0 0
    %97 = vmatpush.bf16.xpose.msra.mxu0 0
    %98 = vmatpush.bf16.xpose.msra.mxu0 0
    %99 = vmatpush.bf16.xpose.msra.mxu0 0
    %100 = vmatpush.bf16.xpose.msra.mxu0 0
    %101 = vmatpush.bf16.xpose.msra.mxu0 %v92
    %102 = vmatmul.bf16.gmra.mxu0 %v89
    %v103 = vpop.f32.mrf.mxu0
    %v104 = vadd.f32 0.0, %v103
    %v105 = vpop.f32.mrf.mxu0
    %106 = vdwg.mxu0
    %v108 = vsel %vm58, %v85, 0
    %v111 = vsel %vm58, %v37, 0
    %113 = vmatpush.bf16.xpose.msra.mxu0 0
    %114 = vmatpush.bf16.xpose.msra.mxu0 0
    %115 = vmatpush.bf16.xpose.msra.mxu0 0
    %116 = vmatpush.bf16.xpose.msra.mxu0 0
    %117 = vmatpush.bf16.xpose.msra.mxu0 0
    %118 = vmatpush.bf16.xpose.msra.mxu0 0
    %119 = vmatpush.bf16.xpose.msra.mxu0 0
    %120 = vmatpush.bf16.xpose.msra.mxu0 %v111
    %121 = vmatmul.bf16.gmra.mxu0 %v108
    %v122 = vpop.f32.mrf.mxu0
    %v123 = vadd.f32 0.0, %v122
    %v124 = vpop.f32.mrf.mxu0
    %125 = vdwg.mxu0
    %v127 = vsel %vm58, %v86, 0
    %v130 = vsel %vm58, %v38, 0
    %132 = vmatpush.bf16.xpose.msra.mxu0 0
    %133 = vmatpush.bf16.xpose.msra.mxu0 0
    %134 = vmatpush.bf16.xpose.msra.mxu0 0
    %135 = vmatpush.bf16.xpose.msra.mxu0 0
    %136 = vmatpush.bf16.xpose.msra.mxu0 0
    %137 = vmatpush.bf16.xpose.msra.mxu0 0
    %138 = vmatpush.bf16.xpose.msra.mxu0 0
    %139 = vmatpush.bf16.xpose.msra.mxu0 %v130
    %140 = vmatmul.bf16.gmra.mxu0 %v127
    %v141 = vpop.f32.mrf.mxu0
    %v142 = vadd.f32 0.0, %v141
    %v143 = vpop.f32.mrf.mxu0
    %144 = vdwg.mxu0
    %v146 = vsel %vm58, %v87, 0
    %v149 = vsel %vm58, %v39, 0
    %151 = vmatpush.bf16.xpose.msra.mxu0 0
    %152 = vmatpush.bf16.xpose.msra.mxu0 0
    %153 = vmatpush.bf16.xpose.msra.mxu0 0
    %154 = vmatpush.bf16.xpose.msra.mxu0 0
    %155 = vmatpush.bf16.xpose.msra.mxu0 0
    %156 = vmatpush.bf16.xpose.msra.mxu0 0
    %157 = vmatpush.bf16.xpose.msra.mxu0 0
    %158 = vmatpush.bf16.xpose.msra.mxu0 %v149
    %159 = vmatmul.bf16.gmra.mxu0 %v146
    %v160 = vpop.f32.mrf.mxu0
    %v161 = vadd.f32 0.0, %v160
    %v162 = vpop.f32.mrf.mxu0
    %163 = vdwg.mxu0
    %vm164 = vcmask 64512
    %165 = vst.msk [vmem:[#allocation5] sm:$0xff] %vm164, %v104
    %166 = vst.msk [vmem:[#allocation5 + $0x40] sm:$0xff] %vm164, %v123
    %167 = vst.msk [vmem:[#allocation5 + $0x80] sm:$0xff] %vm164, %v142
    %168 = vst.msk [vmem:[#allocation5 + $0xc0] sm:$0xff] %vm164, %v161
    %s169 = scalar_lea.vmem [#allocation2], 8
    %v170 = vld [vmem:[%s169] sm:$0xf]
    %v171 = vld [vmem:[%s169 + $0x4] sm:$0xf]
    %v174 = vunpack.c.l.b16 %v170
    %v175 = vunpack.c.l.b16 %v171
    %v176 = vpack.c.b16 %v175, %v174
    %178 = vmatpush.bf16.msra.mxu0 0
    %179 = vmatpush.bf16.msra.mxu0 0
    %180 = vmatpush.bf16.msra.mxu0 0
    %181 = vmatpush.bf16.msra.mxu0 0
    %182 = vmatpush.bf16.msra.mxu0 0
    %183 = vmatpush.bf16.msra.mxu0 0
    %184 = vmatpush.bf16.msra.mxu0 0
    %185 = vmatpush.bf16.msra.mxu0 %v176
    %186 = vmatmul.bf16.gmra.mxu0 %v60
    %v187 = vpop.f32.mrf.mxu0
    %v188 = vadd.f32 0.0, %v187
    %v189 = vpop.f32.mrf.mxu0
    %v190 = vadd.f32 0.0, %v189
    %191 = vmatmul.bf16.gmra.mxu0 %v63
    %v192 = vpop.f32.mrf.mxu0
    %v193 = vadd.f32 0.0, %v192
    %v194 = vpop.f32.mrf.mxu0
    %v195 = vadd.f32 0.0, %v194
    %196 = vdwg.mxu0
    %v197 = vpack.c.bf16 %v188, %v188
    %v198 = vpack.c.bf16 %v190, %v190
    %v199 = vpack.c.bf16 %v193, %v193
    %v200 = vpack.c.bf16 %v195, %v195
    %v202 = vsel %vm58, %v197, 0
    %204 = vmatpush.bf16.xpose.msra.mxu0 0
    %205 = vmatpush.bf16.xpose.msra.mxu0 0
    %206 = vmatpush.bf16.xpose.msra.mxu0 0
    %207 = vmatpush.bf16.xpose.msra.mxu0 0
    %208 = vmatpush.bf16.xpose.msra.mxu0 0
    %209 = vmatpush.bf16.xpose.msra.mxu0 0
    %210 = vmatpush.bf16.xpose.msra.mxu0 0
    %211 = vmatpush.bf16.xpose.msra.mxu0 %v92
    %212 = vmatmul.bf16.gmra.mxu0 %v202
    %v213 = vpop.f32.mrf.mxu0
    %v214 = vadd.f32 0.0, %v213
    %v215 = vpop.f32.mrf.mxu0
    %216 = vdwg.mxu0
    %v218 = vsel %vm58, %v198, 0
    %220 = vmatpush.bf16.xpose.msra.mxu0 0
    %221 = vmatpush.bf16.xpose.msra.mxu0 0
    %222 = vmatpush.bf16.xpose.msra.mxu0 0
    %223 = vmatpush.bf16.xpose.msra.mxu0 0
    %224 = vmatpush.bf16.xpose.msra.mxu0 0
    %225 = vmatpush.bf16.xpose.msra.mxu0 0
    %226 = vmatpush.bf16.xpose.msra.mxu0 0
    %227 = vmatpush.bf16.xpose.msra.mxu0 %v111
    %228 = vmatmul.bf16.gmra.mxu0 %v218
    %v229 = vpop.f32.mrf.mxu0
    %v230 = vadd.f32 0.0, %v229
    %v231 = vpop.f32.mrf.mxu0
    %232 = vdwg.mxu0
    %v234 = vsel %vm58, %v199, 0
    %236 = vmatpush.bf16.xpose.msra.mxu0 0
    %237 = vmatpush.bf16.xpose.msra.mxu0 0
    %238 = vmatpush.bf16.xpose.msra.mxu0 0
    %239 = vmatpush.bf16.xpose.msra.mxu0 0
    %240 = vmatpush.bf16.xpose.msra.mxu0 0
    %241 = vmatpush.bf16.xpose.msra.mxu0 0
    %242 = vmatpush.bf16.xpose.msra.mxu0 0
    %243 = vmatpush.bf16.xpose.msra.mxu0 %v130
    %244 = vmatmul.bf16.gmra.mxu0 %v234
    %v245 = vpop.f32.mrf.mxu0
    %v246 = vadd.f32 0.0, %v245
    %v247 = vpop.f32.mrf.mxu0
    %248 = vdwg.mxu0
    %v250 = vsel %vm58, %v200, 0
    %252 = vmatpush.bf16.xpose.msra.mxu0 0
    %253 = vmatpush.bf16.xpose.msra.mxu0 0
    %254 = vmatpush.bf16.xpose.msra.mxu0 0
    %255 = vmatpush.bf16.xpose.msra.mxu0 0
    %256 = vmatpush.bf16.xpose.msra.mxu0 0
    %257 = vmatpush.bf16.xpose.msra.mxu0 0
    %258 = vmatpush.bf16.xpose.msra.mxu0 0
    %259 = vmatpush.bf16.xpose.msra.mxu0 %v149
    %260 = vmatmul.bf16.gmra.mxu0 %v250
    %v261 = vpop.f32.mrf.mxu0
    %v262 = vadd.f32 0.0, %v261
    %v263 = vpop.f32.mrf.mxu0
    %264 = vdwg.mxu0
    %s265 = scalar_lea.vmem [#allocation5], 8
    %266 = vst.msk [vmem:[%s265] sm:$0xff] %vm164, %v214
    %267 = vst.msk [vmem:[%s265 + $0x40] sm:$0xff] %vm164, %v230
    %268 = vst.msk [vmem:[%s265 + $0x80] sm:$0xff] %vm164, %v246
    %269 = vst.msk [vmem:[%s265 + $0xc0] sm:$0xff] %vm164, %v262
    %s270 = scalar_lea.vmem [#allocation2], 16
    %v271 = vld [vmem:[%s270] sm:$0xf]
    %v272 = vld [vmem:[%s270 + $0x4] sm:$0xf]
    %v275 = vunpack.c.l.b16 %v271
    %v276 = vunpack.c.l.b16 %v272
    %v277 = vpack.c.b16 %v276, %v275
    %279 = vmatpush.bf16.msra.mxu0 0
    %280 = vmatpush.bf16.msra.mxu0 0
    %281 = vmatpush.bf16.msra.mxu0 0
    %282 = vmatpush.bf16.msra.mxu0 0
    %283 = vmatpush.bf16.msra.mxu0 0
    %284 = vmatpush.bf16.msra.mxu0 0
    %285 = vmatpush.bf16.msra.mxu0 0
    %286 = vmatpush.bf16.msra.mxu0 %v277
    %287 = vmatmul.bf16.gmra.mxu0 %v60
    %v288 = vpop.f32.mrf.mxu0
    %v289 = vadd.f32 0.0, %v288
    %v290 = vpop.f32.mrf.mxu0
    %v291 = vadd.f32 0.0, %v290
    %292 = vmatmul.bf16.gmra.mxu0 %v63
    %v293 = vpop.f32.mrf.mxu0
    %v294 = vadd.f32 0.0, %v293
    %v295 = vpop.f32.mrf.mxu0
    %v296 = vadd.f32 0.0, %v295
    %297 = vdwg.mxu0
    %v298 = vpack.c.bf16 %v289, %v289
    %v299 = vpack.c.bf16 %v291, %v291
    %v300 = vpack.c.bf16 %v294, %v294
    %v301 = vpack.c.bf16 %v296, %v296
    %v303 = vsel %vm58, %v298, 0
    %305 = vmatpush.bf16.xpose.msra.mxu0 0
    %306 = vmatpush.bf16.xpose.msra.mxu0 0
    %307 = vmatpush.bf16.xpose.msra.mxu0 0
    %308 = vmatpush.bf16.xpose.msra.mxu0 0
    %309 = vmatpush.bf16.xpose.msra.mxu0 0
    %310 = vmatpush.bf16.xpose.msra.mxu0 0
    %311 = vmatpush.bf16.xpose.msra.mxu0 0
    %312 = vmatpush.bf16.xpose.msra.mxu0 %v92
    %313 = vmatmul.bf16.gmra.mxu0 %v303
    %v314 = vpop.f32.mrf.mxu0
    %v315 = vadd.f32 0.0, %v314
    %v316 = vpop.f32.mrf.mxu0
    %317 = vdwg.mxu0
    %v319 = vsel %vm58, %v299, 0
    %321 = vmatpush.bf16.xpose.msra.mxu0 0
    %322 = vmatpush.bf16.xpose.msra.mxu0 0
    %323 = vmatpush.bf16.xpose.msra.mxu0 0
    %324 = vmatpush.bf16.xpose.msra.mxu0 0
    %325 = vmatpush.bf16.xpose.msra.mxu0 0
    %326 = vmatpush.bf16.xpose.msra.mxu0 0
    %327 = vmatpush.bf16.xpose.msra.mxu0 0
    %328 = vmatpush.bf16.xpose.msra.mxu0 %v111
    %329 = vmatmul.bf16.gmra.mxu0 %v319
    %v330 = vpop.f32.mrf.mxu0
    %v331 = vadd.f32 0.0, %v330
    %v332 = vpop.f32.mrf.mxu0
    %333 = vdwg.mxu0
    %v335 = vsel %vm58, %v300, 0
    %337 = vmatpush.bf16.xpose.msra.mxu0 0
    %338 = vmatpush.bf16.xpose.msra.mxu0 0
    %339 = vmatpush.bf16.xpose.msra.mxu0 0
    %340 = vmatpush.bf16.xpose.msra.mxu0 0
    %341 = vmatpush.bf16.xpose.msra.mxu0 0
    %342 = vmatpush.bf16.xpose.msra.mxu0 0
    %343 = vmatpush.bf16.xpose.msra.mxu0 0
    %344 = vmatpush.bf16.xpose.msra.mxu0 %v130
    %345 = vmatmul.bf16.gmra.mxu0 %v335
    %v346 = vpop.f32.mrf.mxu0
    %v347 = vadd.f32 0.0, %v346
    %v348 = vpop.f32.mrf.mxu0
    %349 = vdwg.mxu0
    %v351 = vsel %vm58, %v301, 0
    %353 = vmatpush.bf16.xpose.msra.mxu0 0
    %354 = vmatpush.bf16.xpose.msra.mxu0 0
    %355 = vmatpush.bf16.xpose.msra.mxu0 0
    %356 = vmatpush.bf16.xpose.msra.mxu0 0
    %357 = vmatpush.bf16.xpose.msra.mxu0 0
    %358 = vmatpush.bf16.xpose.msra.mxu0 0
    %359 = vmatpush.bf16.xpose.msra.mxu0 0
    %360 = vmatpush.bf16.xpose.msra.mxu0 %v149
    %361 = vmatmul.bf16.gmra.mxu0 %v351
    %v362 = vpop.f32.mrf.mxu0
    %v363 = vadd.f32 0.0, %v362
    %v364 = vpop.f32.mrf.mxu0
    %365 = vdwg.mxu0
    %s366 = scalar_lea.vmem [#allocation5], 16
    %367 = vst.msk [vmem:[%s366] sm:$0xff] %vm164, %v315
    %368 = vst.msk [vmem:[%s366 + $0x40] sm:$0xff] %vm164, %v331
    %369 = vst.msk [vmem:[%s366 + $0x80] sm:$0xff] %vm164, %v347
    %370 = vst.msk [vmem:[%s366 + $0xc0] sm:$0xff] %vm164, %v363
    %s371 = scalar_lea.vmem [#allocation2], 24
    %v372 = vld [vmem:[%s371] sm:$0xf]
    %v373 = vld [vmem:[%s371 + $0x4] sm:$0xf]
    %v376 = vunpack.c.l.b16 %v372
    %v377 = vunpack.c.l.b16 %v373
    %v378 = vpack.c.b16 %v377, %v376
    %380 = vmatpush.bf16.msra.mxu0 0
    %381 = vmatpush.bf16.msra.mxu0 0
    %382 = vmatpush.bf16.msra.mxu0 0
    %383 = vmatpush.bf16.msra.mxu0 0
    %384 = vmatpush.bf16.msra.mxu0 0
    %385 = vmatpush.bf16.msra.mxu0 0
    %386 = vmatpush.bf16.msra.mxu0 0
    %387 = vmatpush.bf16.msra.mxu0 %v378
    %388 = vmatmul.bf16.gmra.mxu0 %v60
    %v389 = vpop.f32.mrf.mxu0
    %v390 = vadd.f32 0.0, %v389
    %v391 = vpop.f32.mrf.mxu0
    %v392 = vadd.f32 0.0, %v391
    %393 = vmatmul.bf16.gmra.mxu0 %v63
    %v394 = vpop.f32.mrf.mxu0
    %v395 = vadd.f32 0.0, %v394
    %v396 = vpop.f32.mrf.mxu0
    %v397 = vadd.f32 0.0, %v396
    %398 = vdwg.mxu0
    %v399 = vpack.c.bf16 %v390, %v390
    %v400 = vpack.c.bf16 %v392, %v392
    %v401 = vpack.c.bf16 %v395, %v395
    %v402 = vpack.c.bf16 %v397, %v397
    %v404 = vsel %vm58, %v399, 0
    %406 = vmatpush.bf16.xpose.msra.mxu0 0
    %407 = vmatpush.bf16.xpose.msra.mxu0 0
    %408 = vmatpush.bf16.xpose.msra.mxu0 0
    %409 = vmatpush.bf16.xpose.msra.mxu0 0
    %410 = vmatpush.bf16.xpose.msra.mxu0 0
    %411 = vmatpush.bf16.xpose.msra.mxu0 0
    %412 = vmatpush.bf16.xpose.msra.mxu0 0
    %413 = vmatpush.bf16.xpose.msra.mxu0 %v92
    %414 = vmatmul.bf16.gmra.mxu0 %v404
    %v415 = vpop.f32.mrf.mxu0
    %v416 = vadd.f32 0.0, %v415
    %v417 = vpop.f32.mrf.mxu0
    %418 = vdwg.mxu0
    %v420 = vsel %vm58, %v400, 0
    %422 = vmatpush.bf16.xpose.msra.mxu0 0
    %423 = vmatpush.bf16.xpose.msra.mxu0 0
    %424 = vmatpush.bf16.xpose.msra.mxu0 0
    %425 = vmatpush.bf16.xpose.msra.mxu0 0
    %426 = vmatpush.bf16.xpose.msra.mxu0 0
    %427 = vmatpush.bf16.xpose.msra.mxu0 0
    %428 = vmatpush.bf16.xpose.msra.mxu0 0
    %429 = vmatpush.bf16.xpose.msra.mxu0 %v111
    %430 = vmatmul.bf16.gmra.mxu0 %v420
    %v431 = vpop.f32.mrf.mxu0
    %v432 = vadd.f32 0.0, %v431
    %v433 = vpop.f32.mrf.mxu0
    %434 = vdwg.mxu0
    %v436 = vsel %vm58, %v401, 0
    %438 = vmatpush.bf16.xpose.msra.mxu0 0
    %439 = vmatpush.bf16.xpose.msra.mxu0 0
    %440 = vmatpush.bf16.xpose.msra.mxu0 0
    %441 = vmatpush.bf16.xpose.msra.mxu0 0
    %442 = vmatpush.bf16.xpose.msra.mxu0 0
    %443 = vmatpush.bf16.xpose.msra.mxu0 0
    %444 = vmatpush.bf16.xpose.msra.mxu0 0
    %445 = vmatpush.bf16.xpose.msra.mxu0 %v130
    %446 = vmatmul.bf16.gmra.mxu0 %v436
    %v447 = vpop.f32.mrf.mxu0
    %v448 = vadd.f32 0.0, %v447
    %v449 = vpop.f32.mrf.mxu0
    %450 = vdwg.mxu0
    %v452 = vsel %vm58, %v402, 0
    %454 = vmatpush.bf16.xpose.msra.mxu0 0
    %455 = vmatpush.bf16.xpose.msra.mxu0 0
    %456 = vmatpush.bf16.xpose.msra.mxu0 0
    %457 = vmatpush.bf16.xpose.msra.mxu0 0
    %458 = vmatpush.bf16.xpose.msra.mxu0 0
    %459 = vmatpush.bf16.xpose.msra.mxu0 0
    %460 = vmatpush.bf16.xpose.msra.mxu0 0
    %461 = vmatpush.bf16.xpose.msra.mxu0 %v149
    %462 = vmatmul.bf16.gmra.mxu0 %v452
    %v463 = vpop.f32.mrf.mxu0
    %v464 = vadd.f32 0.0, %v463
    %v465 = vpop.f32.mrf.mxu0
    %466 = vdwg.mxu0
    %s467 = scalar_lea.vmem [#allocation5], 24
    %468 = vst.msk [vmem:[%s467] sm:$0xff] %vm164, %v416
    %469 = vst.msk [vmem:[%s467 + $0x40] sm:$0xff] %vm164, %v432
    %470 = vst.msk [vmem:[%s467 + $0x80] sm:$0xff] %vm164, %v448
    %471 = vst.msk [vmem:[%s467 + $0xc0] sm:$0xff] %vm164, %v464
    %s472 = scalar_lea.vmem [#allocation2], 32
    %v473 = vld [vmem:[%s472] sm:$0xf]
    %v474 = vld [vmem:[%s472 + $0x4] sm:$0xf]
    %v477 = vunpack.c.l.b16 %v473
    %v478 = vunpack.c.l.b16 %v474
    %v479 = vpack.c.b16 %v478, %v477
    %481 = vmatpush.bf16.msra.mxu0 0
    %482 = vmatpush.bf16.msra.mxu0 0
    %483 = vmatpush.bf16.msra.mxu0 0
    %484 = vmatpush.bf16.msra.mxu0 0
    %485 = vmatpush.bf16.msra.mxu0 0
    %486 = vmatpush.bf16.msra.mxu0 0
    %487 = vmatpush.bf16.msra.mxu0 0
    %488 = vmatpush.bf16.msra.mxu0 %v479
    %489 = vmatmul.bf16.gmra.mxu0 %v60
    %v490 = vpop.f32.mrf.mxu0
    %v491 = vadd.f32 0.0, %v490
    %v492 = vpop.f32.mrf.mxu0
    %v493 = vadd.f32 0.0, %v492
    %494 = vmatmul.bf16.gmra.mxu0 %v63
    %v495 = vpop.f32.mrf.mxu0
    %v496 = vadd.f32 0.0, %v495
    %v497 = vpop.f32.mrf.mxu0
    %v498 = vadd.f32 0.0, %v497
    %499 = vdwg.mxu0
    %v500 = vpack.c.bf16 %v491, %v491
    %v501 = vpack.c.bf16 %v493, %v493
    %v502 = vpack.c.bf16 %v496, %v496
    %v503 = vpack.c.bf16 %v498, %v498
    %v505 = vsel %vm58, %v500, 0
    %507 = vmatpush.bf16.xpose.msra.mxu0 0
    %508 = vmatpush.bf16.xpose.msra.mxu0 0
    %509 = vmatpush.bf16.xpose.msra.mxu0 0
    %510 = vmatpush.bf16.xpose.msra.mxu0 0
    %511 = vmatpush.bf16.xpose.msra.mxu0 0
    %512 = vmatpush.bf16.xpose.msra.mxu0 0
    %513 = vmatpush.bf16.xpose.msra.mxu0 0
    %514 = vmatpush.bf16.xpose.msra.mxu0 %v92
    %515 = vmatmul.bf16.gmra.mxu0 %v505
    %v516 = vpop.f32.mrf.mxu0
    %v517 = vadd.f32 0.0, %v516
    %v518 = vpop.f32.mrf.mxu0
    %519 = vdwg.mxu0
    %v521 = vsel %vm58, %v501, 0
    %523 = vmatpush.bf16.xpose.msra.mxu0 0
    %524 = vmatpush.bf16.xpose.msra.mxu0 0
    %525 = vmatpush.bf16.xpose.msra.mxu0 0
    %526 = vmatpush.bf16.xpose.msra.mxu0 0
    %527 = vmatpush.bf16.xpose.msra.mxu0 0
    %528 = vmatpush.bf16.xpose.msra.mxu0 0
    %529 = vmatpush.bf16.xpose.msra.mxu0 0
    %530 = vmatpush.bf16.xpose.msra.mxu0 %v111
    %531 = vmatmul.bf16.gmra.mxu0 %v521
    %v532 = vpop.f32.mrf.mxu0
    %v533 = vadd.f32 0.0, %v532
    %v534 = vpop.f32.mrf.mxu0
    %535 = vdwg.mxu0
    %v537 = vsel %vm58, %v502, 0
    %539 = vmatpush.bf16.xpose.msra.mxu0 0
    %540 = vmatpush.bf16.xpose.msra.mxu0 0
    %541 = vmatpush.bf16.xpose.msra.mxu0 0
    %542 = vmatpush.bf16.xpose.msra.mxu0 0
    %543 = vmatpush.bf16.xpose.msra.mxu0 0
    %544 = vmatpush.bf16.xpose.msra.mxu0 0
    %545 = vmatpush.bf16.xpose.msra.mxu0 0
    %546 = vmatpush.bf16.xpose.msra.mxu0 %v130
    %547 = vmatmul.bf16.gmra.mxu0 %v537
    %v548 = vpop.f32.mrf.mxu0
    %v549 = vadd.f32 0.0, %v548
    %v550 = vpop.f32.mrf.mxu0
    %551 = vdwg.mxu0
    %v553 = vsel %vm58, %v503, 0
    %555 = vmatpush.bf16.xpose.msra.mxu0 0
    %556 = vmatpush.bf16.xpose.msra.mxu0 0
    %557 = vmatpush.bf16.xpose.msra.mxu0 0
    %558 = vmatpush.bf16.xpose.msra.mxu0 0
    %559 = vmatpush.bf16.xpose.msra.mxu0 0
    %560 = vmatpush.bf16.xpose.msra.mxu0 0
    %561 = vmatpush.bf16.xpose.msra.mxu0 0
    %562 = vmatpush.bf16.xpose.msra.mxu0 %v149
    %563 = vmatmul.bf16.gmra.mxu0 %v553
    %v564 = vpop.f32.mrf.mxu0
    %v565 = vadd.f32 0.0, %v564
    %v566 = vpop.f32.mrf.mxu0
    %567 = vdwg.mxu0
    %s568 = scalar_lea.vmem [#allocation5], 32
    %569 = vst.msk [vmem:[%s568] sm:$0xff] %vm164, %v517
    %570 = vst.msk [vmem:[%s568 + $0x40] sm:$0xff] %vm164, %v533
    %571 = vst.msk [vmem:[%s568 + $0x80] sm:$0xff] %vm164, %v549
    %572 = vst.msk [vmem:[%s568 + $0xc0] sm:$0xff] %vm164, %v565
    %s573 = scalar_lea.vmem [#allocation2], 40
    %v574 = vld [vmem:[%s573] sm:$0xf]
    %v575 = vld [vmem:[%s573 + $0x4] sm:$0xf]
    %v578 = vunpack.c.l.b16 %v574
    %v579 = vunpack.c.l.b16 %v575
    %v580 = vpack.c.b16 %v579, %v578
    %582 = vmatpush.bf16.msra.mxu0 0
    %583 = vmatpush.bf16.msra.mxu0 0
    %584 = vmatpush.bf16.msra.mxu0 0
    %585 = vmatpush.bf16.msra.mxu0 0
    %586 = vmatpush.bf16.msra.mxu0 0
    %587 = vmatpush.bf16.msra.mxu0 0
    %588 = vmatpush.bf16.msra.mxu0 0
    %589 = vmatpush.bf16.msra.mxu0 %v580
    %590 = vmatmul.bf16.gmra.mxu0 %v60
    %v591 = vpop.f32.mrf.mxu0
    %v592 = vadd.f32 0.0, %v591
    %v593 = vpop.f32.mrf.mxu0
    %v594 = vadd.f32 0.0, %v593
    %595 = vmatmul.bf16.gmra.mxu0 %v63
    %v596 = vpop.f32.mrf.mxu0
    %v597 = vadd.f32 0.0, %v596
    %v598 = vpop.f32.mrf.mxu0
    %v599 = vadd.f32 0.0, %v598
    %600 = vdwg.mxu0
    %v601 = vpack.c.bf16 %v592, %v592
    %v602 = vpack.c.bf16 %v594, %v594
    %v603 = vpack.c.bf16 %v597, %v597
    %v604 = vpack.c.bf16 %v599, %v599
    %v606 = vsel %vm58, %v601, 0
    %608 = vmatpush.bf16.xpose.msra.mxu0 0
    %609 = vmatpush.bf16.xpose.msra.mxu0 0
    %610 = vmatpush.bf16.xpose.msra.mxu0 0
    %611 = vmatpush.bf16.xpose.msra.mxu0 0
    %612 = vmatpush.bf16.xpose.msra.mxu0 0
    %613 = vmatpush.bf16.xpose.msra.mxu0 0
    %614 = vmatpush.bf16.xpose.msra.mxu0 0
    %615 = vmatpush.bf16.xpose.msra.mxu0 %v92
    %616 = vmatmul.bf16.gmra.mxu0 %v606
    %v617 = vpop.f32.mrf.mxu0
    %v618 = vadd.f32 0.0, %v617
    %v619 = vpop.f32.mrf.mxu0
    %620 = vdwg.mxu0
    %v622 = vsel %vm58, %v602, 0
    %624 = vmatpush.bf16.xpose.msra.mxu0 0
    %625 = vmatpush.bf16.xpose.msra.mxu0 0
    %626 = vmatpush.bf16.xpose.msra.mxu0 0
    %627 = vmatpush.bf16.xpose.msra.mxu0 0
    %628 = vmatpush.bf16.xpose.msra.mxu0 0
    %629 = vmatpush.bf16.xpose.msra.mxu0 0
    %630 = vmatpush.bf16.xpose.msra.mxu0 0
    %631 = vmatpush.bf16.xpose.msra.mxu0 %v111
    %632 = vmatmul.bf16.gmra.mxu0 %v622
    %v633 = vpop.f32.mrf.mxu0
    %v634 = vadd.f32 0.0, %v633
    %v635 = vpop.f32.mrf.mxu0
    %636 = vdwg.mxu0
    %v638 = vsel %vm58, %v603, 0
    %640 = vmatpush.bf16.xpose.msra.mxu0 0
    %641 = vmatpush.bf16.xpose.msra.mxu0 0
    %642 = vmatpush.bf16.xpose.msra.mxu0 0
    %643 = vmatpush.bf16.xpose.msra.mxu0 0
    %644 = vmatpush.bf16.xpose.msra.mxu0 0
    %645 = vmatpush.bf16.xpose.msra.mxu0 0
    %646 = vmatpush.bf16.xpose.msra.mxu0 0
    %647 = vmatpush.bf16.xpose.msra.mxu0 %v130
    %648 = vmatmul.bf16.gmra.mxu0 %v638
    %v649 = vpop.f32.mrf.mxu0
    %v650 = vadd.f32 0.0, %v649
    %v651 = vpop.f32.mrf.mxu0
    %652 = vdwg.mxu0
    %v654 = vsel %vm58, %v604, 0
    %656 = vmatpush.bf16.xpose.msra.mxu0 0
    %657 = vmatpush.bf16.xpose.msra.mxu0 0
    %658 = vmatpush.bf16.xpose.msra.mxu0 0
    %659 = vmatpush.bf16.xpose.msra.mxu0 0
    %660 = vmatpush.bf16.xpose.msra.mxu0 0
    %661 = vmatpush.bf16.xpose.msra.mxu0 0
    %662 = vmatpush.bf16.xpose.msra.mxu0 0
    %663 = vmatpush.bf16.xpose.msra.mxu0 %v149
    %664 = vmatmul.bf16.gmra.mxu0 %v654
    %v665 = vpop.f32.mrf.mxu0
    %v666 = vadd.f32 0.0, %v665
    %v667 = vpop.f32.mrf.mxu0
    %668 = vdwg.mxu0
    %s669 = scalar_lea.vmem [#allocation5], 40
    %670 = vst.msk [vmem:[%s669] sm:$0xff] %vm164, %v618
    %671 = vst.msk [vmem:[%s669 + $0x40] sm:$0xff] %vm164, %v634
    %672 = vst.msk [vmem:[%s669 + $0x80] sm:$0xff] %vm164, %v650
    %673 = vst.msk [vmem:[%s669 + $0xc0] sm:$0xff] %vm164, %v666
    %s674 = scalar_lea.vmem [#allocation2], 48
    %v675 = vld [vmem:[%s674] sm:$0xf]
    %v676 = vld [vmem:[%s674 + $0x4] sm:$0xf]
    %v679 = vunpack.c.l.b16 %v675
    %v680 = vunpack.c.l.b16 %v676
    %v681 = vpack.c.b16 %v680, %v679
    %683 = vmatpush.bf16.msra.mxu0 0
    %684 = vmatpush.bf16.msra.mxu0 0
    %685 = vmatpush.bf16.msra.mxu0 0
    %686 = vmatpush.bf16.msra.mxu0 0
    %687 = vmatpush.bf16.msra.mxu0 0
    %688 = vmatpush.bf16.msra.mxu0 0
    %689 = vmatpush.bf16.msra.mxu0 0
    %690 = vmatpush.bf16.msra.mxu0 %v681
    %691 = vmatmul.bf16.gmra.mxu0 %v60
    %v692 = vpop.f32.mrf.mxu0
    %v693 = vadd.f32 0.0, %v692
    %v694 = vpop.f32.mrf.mxu0
    %v695 = vadd.f32 0.0, %v694
    %696 = vmatmul.bf16.gmra.mxu0 %v63
    %v697 = vpop.f32.mrf.mxu0
    %v698 = vadd.f32 0.0, %v697
    %v699 = vpop.f32.mrf.mxu0
    %v700 = vadd.f32 0.0, %v699
    %701 = vdwg.mxu0
    %v702 = vpack.c.bf16 %v693, %v693
    %v703 = vpack.c.bf16 %v695, %v695
    %v704 = vpack.c.bf16 %v698, %v698
    %v705 = vpack.c.bf16 %v700, %v700
    %v707 = vsel %vm58, %v702, 0
    %709 = vmatpush.bf16.xpose.msra.mxu0 0
    %710 = vmatpush.bf16.xpose.msra.mxu0 0
    %711 = vmatpush.bf16.xpose.msra.mxu0 0
    %712 = vmatpush.bf16.xpose.msra.mxu0 0
    %713 = vmatpush.bf16.xpose.msra.mxu0 0
    %714 = vmatpush.bf16.xpose.msra.mxu0 0
    %715 = vmatpush.bf16.xpose.msra.mxu0 0
    %716 = vmatpush.bf16.xpose.msra.mxu0 %v92
    %717 = vmatmul.bf16.gmra.mxu0 %v707
    %v718 = vpop.f32.mrf.mxu0
    %v719 = vadd.f32 0.0, %v718
    %v720 = vpop.f32.mrf.mxu0
    %721 = vdwg.mxu0
    %v723 = vsel %vm58, %v703, 0
    %725 = vmatpush.bf16.xpose.msra.mxu0 0
    %726 = vmatpush.bf16.xpose.msra.mxu0 0
    %727 = vmatpush.bf16.xpose.msra.mxu0 0
    %728 = vmatpush.bf16.xpose.msra.mxu0 0
    %729 = vmatpush.bf16.xpose.msra.mxu0 0
    %730 = vmatpush.bf16.xpose.msra.mxu0 0
    %731 = vmatpush.bf16.xpose.msra.mxu0 0
    %732 = vmatpush.bf16.xpose.msra.mxu0 %v111
    %733 = vmatmul.bf16.gmra.mxu0 %v723
    %v734 = vpop.f32.mrf.mxu0
    %v735 = vadd.f32 0.0, %v734
    %v736 = vpop.f32.mrf.mxu0
    %737 = vdwg.mxu0
    %v739 = vsel %vm58, %v704, 0
    %741 = vmatpush.bf16.xpose.msra.mxu0 0
    %742 = vmatpush.bf16.xpose.msra.mxu0 0
    %743 = vmatpush.bf16.xpose.msra.mxu0 0
    %744 = vmatpush.bf16.xpose.msra.mxu0 0
    %745 = vmatpush.bf16.xpose.msra.mxu0 0
    %746 = vmatpush.bf16.xpose.msra.mxu0 0
    %747 = vmatpush.bf16.xpose.msra.mxu0 0
    %748 = vmatpush.bf16.xpose.msra.mxu0 %v130
    %749 = vmatmul.bf16.gmra.mxu0 %v739
    %v750 = vpop.f32.mrf.mxu0
    %v751 = vadd.f32 0.0, %v750
    %v752 = vpop.f32.mrf.mxu0
    %753 = vdwg.mxu0
    %v755 = vsel %vm58, %v705, 0
    %757 = vmatpush.bf16.xpose.msra.mxu0 0
    %758 = vmatpush.bf16.xpose.msra.mxu0 0
    %759 = vmatpush.bf16.xpose.msra.mxu0 0
    %760 = vmatpush.bf16.xpose.msra.mxu0 0
    %761 = vmatpush.bf16.xpose.msra.mxu0 0
    %762 = vmatpush.bf16.xpose.msra.mxu0 0
    %763 = vmatpush.bf16.xpose.msra.mxu0 0
    %764 = vmatpush.bf16.xpose.msra.mxu0 %v149
    %765 = vmatmul.bf16.gmra.mxu0 %v755
    %v766 = vpop.f32.mrf.mxu0
    %v767 = vadd.f32 0.0, %v766
    %v768 = vpop.f32.mrf.mxu0
    %769 = vdwg.mxu0
    %s770 = scalar_lea.vmem [#allocation5], 48
    %771 = vst.msk [vmem:[%s770] sm:$0xff] %vm164, %v719
    %772 = vst.msk [vmem:[%s770 + $0x40] sm:$0xff] %vm164, %v735
    %773 = vst.msk [vmem:[%s770 + $0x80] sm:$0xff] %vm164, %v751
    %774 = vst.msk [vmem:[%s770 + $0xc0] sm:$0xff] %vm164, %v767
    %s775 = scalar_lea.vmem [#allocation2], 56
    %v776 = vld [vmem:[%s775] sm:$0xf]
    %v777 = vld [vmem:[%s775 + $0x4] sm:$0xf]
    %v780 = vunpack.c.l.b16 %v776
    %v781 = vunpack.c.l.b16 %v777
    %v782 = vpack.c.b16 %v781, %v780
    %784 = vmatpush.bf16.msra.mxu0 0
    %785 = vmatpush.bf16.msra.mxu0 0
    %786 = vmatpush.bf16.msra.mxu0 0
    %787 = vmatpush.bf16.msra.mxu0 0
    %788 = vmatpush.bf16.msra.mxu0 0
    %789 = vmatpush.bf16.msra.mxu0 0
    %790 = vmatpush.bf16.msra.mxu0 0
    %791 = vmatpush.bf16.msra.mxu0 %v782
    %792 = vmatmul.bf16.gmra.mxu0 %v60
    %v793 = vpop.f32.mrf.mxu0
    %v794 = vadd.f32 0.0, %v793
    %v795 = vpop.f32.mrf.mxu0
    %v796 = vadd.f32 0.0, %v795
    %797 = vmatmul.bf16.gmra.mxu0 %v63
    %v798 = vpop.f32.mrf.mxu0
    %v799 = vadd.f32 0.0, %v798
    %v800 = vpop.f32.mrf.mxu0
    %v801 = vadd.f32 0.0, %v800
    %802 = vdwg.mxu0
    %v803 = vpack.c.bf16 %v794, %v794
    %v804 = vpack.c.bf16 %v796, %v796
    %v805 = vpack.c.bf16 %v799, %v799
    %v806 = vpack.c.bf16 %v801, %v801
    %v808 = vsel %vm58, %v803, 0
    %810 = vmatpush.bf16.xpose.msra.mxu0 0
    %811 = vmatpush.bf16.xpose.msra.mxu0 0
    %812 = vmatpush.bf16.xpose.msra.mxu0 0
    %813 = vmatpush.bf16.xpose.msra.mxu0 0
    %814 = vmatpush.bf16.xpose.msra.mxu0 0
    %815 = vmatpush.bf16.xpose.msra.mxu0 0
    %816 = vmatpush.bf16.xpose.msra.mxu0 0
    %817 = vmatpush.bf16.xpose.msra.mxu0 %v92
    %818 = vmatmul.bf16.gmra.mxu0 %v808
    %v819 = vpop.f32.mrf.mxu0
    %v820 = vadd.f32 0.0, %v819
    %v821 = vpop.f32.mrf.mxu0
    %822 = vdwg.mxu0
    %v824 = vsel %vm58, %v804, 0
    %826 = vmatpush.bf16.xpose.msra.mxu0 0
    %827 = vmatpush.bf16.xpose.msra.mxu0 0
    %828 = vmatpush.bf16.xpose.msra.mxu0 0
    %829 = vmatpush.bf16.xpose.msra.mxu0 0
    %830 = vmatpush.bf16.xpose.msra.mxu0 0
    %831 = vmatpush.bf16.xpose.msra.mxu0 0
    %832 = vmatpush.bf16.xpose.msra.mxu0 0
    %833 = vmatpush.bf16.xpose.msra.mxu0 %v111
    %834 = vmatmul.bf16.gmra.mxu0 %v824
    %v835 = vpop.f32.mrf.mxu0
    %v836 = vadd.f32 0.0, %v835
    %v837 = vpop.f32.mrf.mxu0
    %838 = vdwg.mxu0
    %v840 = vsel %vm58, %v805, 0
    %842 = vmatpush.bf16.xpose.msra.mxu0 0
    %843 = vmatpush.bf16.xpose.msra.mxu0 0
    %844 = vmatpush.bf16.xpose.msra.mxu0 0
    %845 = vmatpush.bf16.xpose.msra.mxu0 0
    %846 = vmatpush.bf16.xpose.msra.mxu0 0
    %847 = vmatpush.bf16.xpose.msra.mxu0 0
    %848 = vmatpush.bf16.xpose.msra.mxu0 0
    %849 = vmatpush.bf16.xpose.msra.mxu0 %v130
    %850 = vmatmul.bf16.gmra.mxu0 %v840
    %v851 = vpop.f32.mrf.mxu0
    %v852 = vadd.f32 0.0, %v851
    %v853 = vpop.f32.mrf.mxu0
    %854 = vdwg.mxu0
    %v856 = vsel %vm58, %v806, 0
    %858 = vmatpush.bf16.xpose.msra.mxu0 0
    %859 = vmatpush.bf16.xpose.msra.mxu0 0
    %860 = vmatpush.bf16.xpose.msra.mxu0 0
    %861 = vmatpush.bf16.xpose.msra.mxu0 0
    %862 = vmatpush.bf16.xpose.msra.mxu0 0
    %863 = vmatpush.bf16.xpose.msra.mxu0 0
    %864 = vmatpush.bf16.xpose.msra.mxu0 0
    %865 = vmatpush.bf16.xpose.msra.mxu0 %v149
    %866 = vmatmul.bf16.gmra.mxu0 %v856
    %v867 = vpop.f32.mrf.mxu0
    %v868 = vadd.f32 0.0, %v867
    %v869 = vpop.f32.mrf.mxu0
    %870 = vdwg.mxu0
    %s871 = scalar_lea.vmem [#allocation5], 56
    %872 = vst.msk [vmem:[%s871] sm:$0xff] %vm164, %v820
    %873 = vst.msk [vmem:[%s871 + $0x40] sm:$0xff] %vm164, %v836
    %874 = vst.msk [vmem:[%s871 + $0x80] sm:$0xff] %vm164, %v852
    %875 = vst.msk [vmem:[%s871 + $0xc0] sm:$0xff] %vm164, %v868
    // Predicated region
    $region18: #{tpu_custom_call.1} parent=1 // pred_check
      _
    $region19: #{tpu_custom_call.1} parent=1 // pred_check_branch
      %877 = sbr.rel (0) target = $region21
    $region20: #{tpu_custom_call.1} parent=1 // pred_region
      %879 = vsyncadd [#allocation4], 0
      %s880 = sshll.u32 [#allocation5], 4
      %s881 = int_to_ptr.vmem [resolvable:$true] %s880
      %s882 = sshll.u32 %s3, 4
      %s883 = int_to_ptr.hbm [resolvable:$true] %s882
      %888 = dma.vmem_to_hbm [thread:$0]  %s881, 4096, %s883, [#allocation4], 128, 128, 8
    $region21: #{tpu_custom_call.1} parent=1 // pred_fallthru
      _
    // Predicated region
    $region22: #{tpu_custom_call.1} parent=1 // pred_check
      _
    $region23: #{tpu_custom_call.1} parent=1 // pred_check_branch
      %890 = sbr.rel (0) target = $region25
    $region24: #{tpu_custom_call.1} parent=1 // pred_region
      %892 = dma.done [#allocation4], 4096
    $region25: #{tpu_custom_call.1} parent=1 // pred_fallthru
      _
    %893 = vsyncpa [#allocation3], 1
    %894 = vsyncpa [#allocation4], 1

</llo_original>
